<compile_context>
chip_gen: v7x
topology: tpu7x:2x2x1
jax: 0.10.0
libtpu: 0.0.40
codegen_flags: <defaults>
</compile_context>

<pallas_src>
import jax
import jax.numpy as jnp
from jax import lax
from jax.experimental import pallas as pl
from jax.experimental.pallas import tpu as pltpu

EPS = 1e-5          # nn.InstanceNorm1d default eps
NEG_SLOPE = 0.01    # nn.LeakyReLU negative_slope


def _leaky_relu(x):
    return jnp.where(x >= 0, x, NEG_SLOPE * x)


def _round_up(v, m):
    return (v + m - 1) // m * m


def atom_emb_kernel(x_ref, s_ref, st_ref, w1_ref, w2_ref, o_ref):
    """One N-tile of the fused forward.

    x_ref : (tN, A*F) f32   flattened atom features
    s_ref : (A*F, A)  f32   segment-mean matrix (1/F where column == atom of row)
    st_ref: (A, A*F)  f32   broadcast-back matrix (1 where row == atom of column)
    w1_ref: (A*F, H)  bf16  Linear1 weight tiled over atoms, pre-scaled by 1/A
    w2_ref: (H, H)    bf16  Linear2 weight (stored (in, out))
    o_ref : (tN, H)
    """
    x = x_ref[...]
    s = s_ref[...]
    st = st_ref[...]

    # --- InstanceNorm over F per (row, atom): segment stats via tiny matmuls
    #     (no lane relayout), two-pass variance like PyTorch. ---
    mu = jnp.dot(x, s, preferred_element_type=jnp.float32)            # (tN, A)
    mu_b = jnp.dot(mu, st, preferred_element_type=jnp.float32)        # (tN, A*F)
    d = x - mu_b
    var = jnp.dot(d * d, s, preferred_element_type=jnp.float32)       # (tN, A)
    rstd_b = jnp.dot(lax.rsqrt(var + EPS), st,
                     preferred_element_type=jnp.float32)              # (tN, A*F)
    xn = d * rstd_b

    # --- Linear1 with the atom-mean folded in (bf16 MXU, f32 accumulation) ---
    h = jnp.dot(xn.astype(jnp.bfloat16), w1_ref[...],
                preferred_element_type=jnp.float32)                   # (tN, H)
    h = _leaky_relu(h)

    # --- InstanceNorm over H per row (two-pass) ---
    mu2 = jnp.mean(h, axis=-1, keepdims=True)
    d2 = h - mu2
    var2 = jnp.mean(d2 * d2, axis=-1, keepdims=True)
    hn = d2 * lax.rsqrt(var2 + EPS)

    # --- Linear2 + LeakyReLU ---
    out = jnp.dot(hn.astype(jnp.bfloat16), w2_ref[...],
                  preferred_element_type=jnp.float32)                 # (tN, H)
    o_ref[...] = _leaky_relu(out).astype(o_ref.dtype)


def atom_emb_forward(x, w1_t, w2_t, *, block_n=1024, out_dtype=jnp.float32):
    """x: (N, A, F) f32.  Weights stored transposed ((in, out)): w1_t (F, H),
    w2_t (H, H).  Returns (N, H) in out_dtype (f32 by default to match the
    PyTorch module; pass bf16 to roughly halve HBM writeback if acceptable)."""
    N, A, F_in = x.shape
    H = w1_t.shape[1]
    AF = A * F_in

    # N-tile: large enough to amortize per-step pipeline overhead, multiple of
    # 256 when large (fills the MXU M-dim on v6e/v7x), capped so the grid keeps
    # >= 2 "parallel" steps when N is large enough (v7x megacore).
    tN = min(block_n, _round_up(pl.cdiv(N, 2), 256))
    tN = max(8, min(tN, _round_up(N, 8)))
    n_pad = _round_up(N, tN)

    # Flatten (A, F) onto lanes: contiguous DMA, ~2x lane padding instead of
    # ~18x for a 3-D (tN, A, F) block.  Padded (zero) rows stay finite and are
    # sliced off at the end.
    x2 = x.reshape(N, AF)
    if n_pad != N:
        x2 = jnp.pad(x2, ((0, n_pad - N), (0, 0)))

    # Constant segment matrices for the per-atom norm.
    atom_of_col = jnp.arange(AF, dtype=jnp.int32) // F_in              # (AF,)
    onehot = (atom_of_col[:, None] ==
              jnp.arange(A, dtype=jnp.int32)[None, :]).astype(jnp.float32)
    s_mean = onehot * (1.0 / F_in)                                     # (AF, A)
    st_bcast = onehot.T                                                # (A, AF)

    # Linear1 with the atom-mean folded in; bf16 weights (MXU-native, half DMA).
    w1_big = (jnp.tile(w1_t, (A, 1)) * (1.0 / A)).astype(jnp.bfloat16)  # (AF, H)
    w2b = w2_t.astype(jnp.bfloat16)

    # Explicit VMEM budget from actual padded, double-buffered tiles + headroom
    # (keeps v5e's 16 MiB default scoped limit from ever being the surprise).
    lane = 128
    out_isz = jnp.dtype(out_dtype).itemsize
    buf_bytes = 2 * (tN * _round_up(AF, lane) * 4
                     + tN * _round_up(H, lane) * out_isz
                     + _round_up(AF, 16) * _round_up(H, lane) * 2      # w1 bf16
                     + _round_up(H, 16) * _round_up(H, lane) * 2       # w2 bf16
                     + _round_up(AF, 8) * lane * 4                     # s_mean
                     + 8 * _round_up(AF, lane) * 4)                    # st_bcast
    vmem_limit = int(min(max(buf_bytes + (2 << 20), 8 << 20), 32 << 20))

    flops = n_pad * (4 * 2 * AF * A        # segment-stat matmuls
                     + 2 * AF * H          # folded Linear1
                     + 2 * H * H           # Linear2
                     + 8 * AF + 8 * H)     # elementwise norm / LeakyReLU
    bytes_accessed = (n_pad * AF * 4 + n_pad * H * out_isz
                      + AF * H * 2 + H * H * 2 + 2 * AF * A * 4)

    out = pl.pallas_call(
        atom_emb_kernel,
        out_shape=jax.ShapeDtypeStruct((n_pad, H), out_dtype),
        grid_spec=pltpu.PrefetchScalarGridSpec(
            num_scalar_prefetch=0,
            grid=(n_pad // tN,),
            in_specs=[
                pl.BlockSpec((tN, AF), lambda i: (i, 0)),
                pl.BlockSpec((AF, A), lambda i: (0, 0)),    # resident constant
                pl.BlockSpec((A, AF), lambda i: (0, 0)),    # resident constant
                pl.BlockSpec((AF, H), lambda i: (0, 0)),    # resident weights
                pl.BlockSpec((H, H), lambda i: (0, 0)),     # resident weights
            ],
            out_specs=pl.BlockSpec((tN, H), lambda i: (i, 0)),
        ),
        compiler_params=pltpu.CompilerParams(
            dimension_semantics=("parallel",),               # megacore on v7x
            vmem_limit_bytes=vmem_limit,
        ),
        cost_estimate=pl.CostEstimate(
            flops=flops,
            transcendentals=n_pad * (A + 1),                 # rsqrt per norm row
            bytes_accessed=bytes_accessed,
        ),
    )(x2, s_mean, st_bcast, w1_big, w2b)

    return out[:N] if n_pad != N else out


def atom_emb_reference_kernelpath(x, w1_t, w2_t):
    """Plain-JAX replica of the kernel's numeric path (bf16 MXU operands,
    atom-mean folded through Linear1, two-pass variance)."""
    N, A, F_in = x.shape
    mu = jnp.mean(x, axis=-1, keepdims=True)
    var = jnp.mean((x - mu) ** 2, axis=-1, keepdims=True)
    xn = (x - mu) * lax.rsqrt(var + EPS)
    xn_flat = xn.reshape(N, A * F_in)
    w1_big = (jnp.tile(w1_t, (A, 1)) / A).astype(jnp.bfloat16)
    h = jnp.dot(xn_flat.astype(jnp.bfloat16), w1_big,
                preferred_element_type=jnp.float32)
    h = jnp.where(h >= 0, h, NEG_SLOPE * h)
    mu2 = jnp.mean(h, axis=-1, keepdims=True)
    var2 = jnp.mean((h - mu2) ** 2, axis=-1, keepdims=True)
    hn = (h - mu2) * lax.rsqrt(var2 + EPS)
    out = jnp.dot(hn.astype(jnp.bfloat16), w2_t.astype(jnp.bfloat16),
                  preferred_element_type=jnp.float32)
    return jnp.where(out >= 0, out, NEG_SLOPE * out)


def atom_emb_reference_fp32(x, w1_t, w2_t):
    """Faithful fp32 replica of the PyTorch forward (original op order)."""
    mu = jnp.mean(x, axis=-1, keepdims=True)
    var = jnp.mean((x - mu) ** 2, axis=-1, keepdims=True)
    xn = (x - mu) / jnp.sqrt(var + EPS)
    h = jnp.einsum("naf,fh->nah", xn, w1_t)
    hm = jnp.mean(h, axis=1)
    hm = jnp.where(hm >= 0, hm, NEG_SLOPE * hm)
    mu2 = jnp.mean(hm, axis=-1, keepdims=True)
    var2 = jnp.mean((hm - mu2) ** 2, axis=-1, keepdims=True)
    hn = (hm - mu2) / jnp.sqrt(var2 + EPS)
    out = hn @ w2_t
    return jnp.where(out >= 0, out, NEG_SLOPE * out)


if __name__ == "__main__":
    # Module defaults: atom_emb_in=7, atom_emb_h=256; small batch / atom counts.
    N, A, F_IN, H = 2, 8, 7, 256

    key = jax.random.PRNGKey(0)
    kx, kw1, kw2, kx2 = jax.random.split(key, 4)

    x = jax.random.normal(kx, (N, A, F_IN), dtype=jnp.float32)

    # nn.Linear-style U(-1/sqrt(fan_in), 1/sqrt(fan_in)) init, stored (in, out).
    b1 = 1.0 / (F_IN ** 0.5)
    w1_t = jax.random.uniform(kw1, (F_IN, H), jnp.float32, minval=-b1, maxval=b1)
    b2 = 1.0 / (H ** 0.5)
    w2_t = jax.random.uniform(kw2, (H, H), jnp.float32, minval=-b2, maxval=b2)

    out = jax.block_until_ready(atom_emb_forward(x, w1_t, w2_t))
    assert out.shape == (N, H)
    assert bool(jnp.all(jnp.isfinite(out)))

    # Check against a reference mirroring the kernel's numeric path (bf16 at
    # the MXU boundary); tolerance covers the bf16 operand rounding.
    ref_k = atom_emb_reference_kernelpath(x, w1_t, w2_t)
    assert jnp.allclose(out, ref_k, atol=2e-2, rtol=2e-2), \
        "mismatch vs kernel-path (bf16 MXU) reference"

    # Check against the faithful fp32 PyTorch-order reference.
    ref_f32 = atom_emb_reference_fp32(x, w1_t, w2_t)
    assert jnp.allclose(out, ref_f32, atol=2e-2, rtol=2e-2), \
        "mismatch vs fp32 reference"

    # Second (still small) shape that exercises row padding and a 2-step
    # "parallel" grid (both v7x TensorCores get work).
    N2 = 600
    x_big = jax.random.normal(kx2, (N2, A, F_IN), dtype=jnp.float32)
    out2 = jax.block_until_ready(atom_emb_forward(x_big, w1_t, w2_t))
    assert out2.shape == (N2, H)
    assert bool(jnp.all(jnp.isfinite(out2)))
    assert jnp.allclose(out2, atom_emb_reference_kernelpath(x_big, w1_t, w2_t),
                        atol=2e-2, rtol=2e-2), "mismatch on padded multi-step grid"

    print("KERNEL_OK")
</pallas_src>

<mosaic_0001>
module attributes {stable_mosaic.version = 11 : i64} {
  func.func @atom_emb_kernel(%arg0: i32, %arg1: memref<8x56xf32, #tpu.memory_space<vmem>>, %arg2: memref<56x8xf32, #tpu.memory_space<vmem>>, %arg3: memref<8x56xf32, #tpu.memory_space<vmem>>, %arg4: memref<56x256xbf16, #tpu.memory_space<vmem>>, %arg5: memref<256x256xbf16, #tpu.memory_space<vmem>>, %arg6: memref<8x256xf32, #tpu.memory_space<vmem>>) attributes {dimension_semantics = [#tpu.dimension_semantics<parallel>], iteration_bounds = array<i64: 1>, scalar_prefetch = 0 : i64, scratch_operands = 0 : i64, tpu.core_type = #tpu.core_type<tc>, window_params = [{transform_indices = @transform_0, window_bounds = array<i64: 8, 56>}, {pipeline_mode = #tpu.pipeline_mode<synchronous>, transform_indices = @transform_1, window_bounds = array<i64: 56, 8>}, {pipeline_mode = #tpu.pipeline_mode<synchronous>, transform_indices = @transform_2, window_bounds = array<i64: 8, 56>}, {pipeline_mode = #tpu.pipeline_mode<synchronous>, transform_indices = @transform_3, window_bounds = array<i64: 56, 256>}, {pipeline_mode = #tpu.pipeline_mode<synchronous>, transform_indices = @transform_4, window_bounds = array<i64: 256, 256>}, {transform_indices = @transform_5, window_bounds = array<i64: 8, 256>}]} {
    %c0 = arith.constant 0 : index
    %c0_0 = arith.constant 0 : index
    %0 = vector.load %arg1[%c0, %c0_0] : memref<8x56xf32, #tpu.memory_space<vmem>>, vector<8x56xf32>
    %c0_1 = arith.constant 0 : index
    %c0_2 = arith.constant 0 : index
    %1 = vector.load %arg2[%c0_1, %c0_2] : memref<56x8xf32, #tpu.memory_space<vmem>>, vector<56x8xf32>
    %c0_3 = arith.constant 0 : index
    %c0_4 = arith.constant 0 : index
    %2 = vector.load %arg3[%c0_3, %c0_4] : memref<8x56xf32, #tpu.memory_space<vmem>>, vector<8x56xf32>
    %cst = arith.constant dense<0.000000e+00> : vector<8x8xf32>
    %3 = tpu.matmul %0, %1, %cst {dimension_numbers = #tpu.dot_dimension_numbers<[1], [0], [0], [1], [0, 0, 1, 1], [], []>} : vector<8x56xf32>, vector<56x8xf32>, vector<8x8xf32> -> vector<8x8xf32>
    %cst_5 = arith.constant dense<0.000000e+00> : vector<8x56xf32>
    %4 = tpu.matmul %3, %2, %cst_5 {dimension_numbers = #tpu.dot_dimension_numbers<[1], [0], [0], [1], [0, 0, 1, 1], [], []>} : vector<8x8xf32>, vector<8x56xf32>, vector<8x56xf32> -> vector<8x56xf32>
    %5 = arith.subf %0, %4 : vector<8x56xf32>
    %6 = arith.mulf %5, %5 : vector<8x56xf32>
    %cst_6 = arith.constant dense<0.000000e+00> : vector<8x8xf32>
    %7 = tpu.matmul %6, %1, %cst_6 {dimension_numbers = #tpu.dot_dimension_numbers<[1], [0], [0], [1], [0, 0, 1, 1], [], []>} : vector<8x56xf32>, vector<56x8xf32>, vector<8x8xf32> -> vector<8x8xf32>
    %cst_7 = arith.constant 9.99999974E-6 : f32
    %8 = vector.broadcast %cst_7 : f32 to vector<8x8xf32>
    %9 = arith.addf %7, %8 : vector<8x8xf32>
    %10 = math.rsqrt %9 : vector<8x8xf32>
    %cst_8 = arith.constant dense<0.000000e+00> : vector<8x56xf32>
    %11 = tpu.matmul %10, %2, %cst_8 {dimension_numbers = #tpu.dot_dimension_numbers<[1], [0], [0], [1], [0, 0, 1, 1], [], []>} : vector<8x8xf32>, vector<8x56xf32>, vector<8x56xf32> -> vector<8x56xf32>
    %12 = arith.mulf %5, %11 : vector<8x56xf32>
    %13 = arith.truncf %12 : vector<8x56xf32> to vector<8x56xbf16>
    %c0_9 = arith.constant 0 : index
    %c0_10 = arith.constant 0 : index
    %14 = vector.load %arg4[%c0_9, %c0_10] : memref<56x256xbf16, #tpu.memory_space<vmem>>, vector<56x256xbf16>
    %cst_11 = arith.constant dense<0.000000e+00> : vector<8x256xf32>
    %15 = tpu.matmul %13, %14, %cst_11 {dimension_numbers = #tpu.dot_dimension_numbers<[1], [0], [0], [1], [0, 0, 1, 1], [], []>} : vector<8x56xbf16>, vector<56x256xbf16>, vector<8x256xf32> -> vector<8x256xf32>
    %cst_12 = arith.constant 0.000000e+00 : f32
    %16 = vector.broadcast %cst_12 : f32 to vector<8x256xf32>
    %17 = arith.cmpf oge, %15, %16 : vector<8x256xf32>
    %cst_13 = arith.constant 0.00999999977 : f32
    %18 = vector.broadcast %cst_13 : f32 to vector<8x256xf32>
    %19 = arith.mulf %18, %15 : vector<8x256xf32>
    %20 = arith.select %17, %15, %19 : vector<8x256xi1>, vector<8x256xf32>
    %cst_14 = arith.constant dense<0.000000e+00> : vector<8xf32>
    %21 = vector.multi_reduction <add>, %20, %cst_14 [1] : vector<8x256xf32> to vector<8xf32>
    %22 = vector.shape_cast %21 : vector<8xf32> to vector<8x1xf32>
    %cst_15 = arith.constant 2.560000e+02 : f32
    %23 = vector.broadcast %cst_15 : f32 to vector<8x1xf32>
    %24 = arith.divf %22, %23 : vector<8x1xf32>
    %25 = vector.broadcast %24 : vector<8x1xf32> to vector<8x256xf32>
    %26 = arith.subf %20, %25 : vector<8x256xf32>
    %27 = arith.mulf %26, %26 : vector<8x256xf32>
    %cst_16 = arith.constant dense<0.000000e+00> : vector<8xf32>
    %28 = vector.multi_reduction <add>, %27, %cst_16 [1] : vector<8x256xf32> to vector<8xf32>
    %29 = vector.shape_cast %28 : vector<8xf32> to vector<8x1xf32>
    %cst_17 = arith.constant 2.560000e+02 : f32
    %30 = vector.broadcast %cst_17 : f32 to vector<8x1xf32>
    %31 = arith.divf %29, %30 : vector<8x1xf32>
    %cst_18 = arith.constant 9.99999974E-6 : f32
    %32 = vector.broadcast %cst_18 : f32 to vector<8x1xf32>
    %33 = arith.addf %31, %32 : vector<8x1xf32>
    %34 = math.rsqrt %33 : vector<8x1xf32>
    %35 = vector.broadcast %34 : vector<8x1xf32> to vector<8x256xf32>
    %36 = arith.mulf %26, %35 : vector<8x256xf32>
    %37 = arith.truncf %36 : vector<8x256xf32> to vector<8x256xbf16>
    %c0_19 = arith.constant 0 : index
    %c0_20 = arith.constant 0 : index
    %38 = vector.load %arg5[%c0_19, %c0_20] : memref<256x256xbf16, #tpu.memory_space<vmem>>, vector<256x256xbf16>
    %cst_21 = arith.constant dense<0.000000e+00> : vector<8x256xf32>
    %39 = tpu.matmul %37, %38, %cst_21 {dimension_numbers = #tpu.dot_dimension_numbers<[1], [0], [0], [1], [0, 0, 1, 1], [], []>} : vector<8x256xbf16>, vector<256x256xbf16>, vector<8x256xf32> -> vector<8x256xf32>
    %cst_22 = arith.constant 0.000000e+00 : f32
    %40 = vector.broadcast %cst_22 : f32 to vector<8x256xf32>
    %41 = arith.cmpf oge, %39, %40 : vector<8x256xf32>
    %cst_23 = arith.constant 0.00999999977 : f32
    %42 = vector.broadcast %cst_23 : f32 to vector<8x256xf32>
    %43 = arith.mulf %42, %39 : vector<8x256xf32>
    %44 = arith.select %41, %39, %43 : vector<8x256xi1>, vector<8x256xf32>
    %c0_24 = arith.constant 0 : index
    %c0_25 = arith.constant 0 : index
    %45 = vector.load %arg6[%c0_24, %c0_25] : memref<8x256xf32, #tpu.memory_space<vmem>>, vector<8x256xf32>
    tpu.vector_store %arg6[%c0_24, %c0_25], %44 {strides = array<i32>} : memref<8x256xf32, #tpu.memory_space<vmem>>, vector<8x256xf32>,
    return
  }
  func.func @transform_0(%arg0: i32) -> (i32, i32) {
    %c0_i32 = arith.constant 0 : i32
    %c0_i32_0 = arith.constant 0 : i32
    return %arg0, %c0_i32 : i32, i32
  }
  func.func @transform_1(%arg0: i32) -> (i32, i32) {
    %c0_i32 = arith.constant 0 : i32
    %c0_i32_0 = arith.constant 0 : i32
    %c0_i32_1 = arith.constant 0 : i32
    return %c0_i32, %c0_i32_0 : i32, i32
  }
  func.func @transform_2(%arg0: i32) -> (i32, i32) {
    %c0_i32 = arith.constant 0 : i32
    %c0_i32_0 = arith.constant 0 : i32
    %c0_i32_1 = arith.constant 0 : i32
    return %c0_i32, %c0_i32_0 : i32, i32
  }
  func.func @transform_3(%arg0: i32) -> (i32, i32) {
    %c0_i32 = arith.constant 0 : i32
    %c0_i32_0 = arith.constant 0 : i32
    %c0_i32_1 = arith.constant 0 : i32
    return %c0_i32, %c0_i32_0 : i32, i32
  }
  func.func @transform_4(%arg0: i32) -> (i32, i32) {
    %c0_i32 = arith.constant 0 : i32
    %c0_i32_0 = arith.constant 0 : i32
    %c0_i32_1 = arith.constant 0 : i32
    return %c0_i32, %c0_i32_0 : i32, i32
  }
  func.func @transform_5(%arg0: i32) -> (i32, i32) {
    %c0_i32 = arith.constant 0 : i32
    %c0_i32_0 = arith.constant 0 : i32
    return %arg0, %c0_i32 : i32, i32
  }
}

</mosaic_0001>

<llo_original>
// kernel: tpu_custom_call.1
$region0: #{tpu_custom_call.1}
  #allocation0 [shape = 'u32[]', space=smem, size = 0x4, offset = 0x4, fixed_abs, tag = 'smem constant byte address 0x4 - core index']
  #allocation1 [shape = 'u32[144,128]{1,0:T(1,128)}', space=vmem, size = 0x12000, scoped, tag = 'internal scratch']
  %s0 = inlined_call_operand.vmem [shape: f32[8,56], index: 0, kind: input, shape index: {}]
  %s1 = inlined_call_operand.vmem [shape: f32[56,8], index: 1, kind: input, shape index: {}]
  %s2 = inlined_call_operand.vmem [shape: f32[8,56], index: 2, kind: input, shape index: {}]
  %s3 = inlined_call_operand.vmem [shape: bf16[56,256], index: 3, kind: input, shape index: {}]
  %s4 = inlined_call_operand.hbm [shape: bf16[256,256], index: 4, kind: input, shape index: {}]
  %s5 = inlined_call_operand.hbm [shape: f32[8,256], index: 5, kind: output, shape index: {}]
  %s6 = sld [smem:[#allocation0]]
  $region34: #{tpu_custom_call.1} parent=0
    _
  %s8 = ssub.s32 1, %s6
  %s9 = scalar_select 0, %s8, %s6
  $region1: #{tpu_custom_call.1} parent=0
    #allocation2 [shape = 'u8[131072]{0}', space=vmem, size = 0x20000, scoped, tag = 'input window, operand 4, single buffered']
    #allocation3 [shape = 's32[1]{0}', space=sflag, size = 0x4, scoped, tag = 'scoped memory for tpu_custom_call.1']
    #allocation4 [shape = 's32[1]{0}', space=sflag, size = 0x4, scoped, tag = 'scoped memory for tpu_custom_call.1']
    #allocation5 [shape = 'u8[8192]{0}', space=vmem, size = 0x2000, scoped, tag = 'output window, operand 0, single buffered']
    %10 = vsyncpa [#allocation3], 0
    %11 = vsyncpa [#allocation4], 0
    // Predicated region
    $region2: #{tpu_custom_call.1} parent=1 // pred_check
      _
    $region3: #{tpu_custom_call.1} parent=1 // pred_check_branch
      %13 = sbr.rel (0) target = $region5
    $region4: #{tpu_custom_call.1} parent=1 // pred_region
      _
    $region5: #{tpu_custom_call.1} parent=1 // pred_fallthru
      _
    // Predicated region
    $region6: #{tpu_custom_call.1} parent=1 // pred_check
      _
    $region7: #{tpu_custom_call.1} parent=1 // pred_check_branch
      %15 = sbr.rel (0) target = $region9
    $region8: #{tpu_custom_call.1} parent=1 // pred_region
      _
    $region9: #{tpu_custom_call.1} parent=1 // pred_fallthru
      _
    // Predicated region
    $region10: #{tpu_custom_call.1} parent=1 // pred_check
      _
    $region11: #{tpu_custom_call.1} parent=1 // pred_check_branch
      %17 = sbr.rel (0) target = $region13
    $region12: #{tpu_custom_call.1} parent=1 // pred_region
      _
    $region13: #{tpu_custom_call.1} parent=1 // pred_fallthru
      _
    // Predicated region
    $region14: #{tpu_custom_call.1} parent=1 // pred_check
      _
    $region15: #{tpu_custom_call.1} parent=1 // pred_check_branch
      %19 = sbr.rel (0) target = $region17
    $region16: #{tpu_custom_call.1} parent=1 // pred_region
      _
    $region17: #{tpu_custom_call.1} parent=1 // pred_fallthru
      _
    // Predicated region
    $region18: #{tpu_custom_call.1} parent=1 // pred_check
      _
    $region19: #{tpu_custom_call.1} parent=1 // pred_check_branch
      %21 = sbr.rel (0) target = $region21
    $region20: #{tpu_custom_call.1} parent=1 // pred_region
      %s23 = ssub.s32 4096, 4096
      %24 = vsyncadd [#allocation3], %s23
      %s25 = sshll.u32 [#allocation2], 4
      %s26 = int_to_ptr.vmem [resolvable:$true] %s25
      %31 = dma.hbm_to_vmem [thread:$0]  %s4, 4096, %s26, [#allocation3], 128, 128, 8
    $region21: #{tpu_custom_call.1} parent=1 // pred_fallthru
      _
    // Predicated region
    $region22: #{tpu_custom_call.1} parent=1 // pred_check
      _
    $region23: #{tpu_custom_call.1} parent=1 // pred_check_branch
      %33 = sbr.rel (0) target = $region25
    $region24: #{tpu_custom_call.1} parent=1 // pred_region
      %34 = dma.done [#allocation3], 4096
    $region25: #{tpu_custom_call.1} parent=1 // pred_fallthru
      _
    %v36 = vld [vmem:[%s0] sm:$0xff]
    %v37 = vld [vmem:[%s1] sm:$0xff]
    %v38 = vld [vmem:[%s1 + $0x8] sm:$0xff]
    %v39 = vld [vmem:[%s1 + $0x10] sm:$0xff]
    %v40 = vld [vmem:[%s1 + $0x18] sm:$0xff]
    %v41 = vld [vmem:[%s1 + $0x20] sm:$0xff]
    %v42 = vld [vmem:[%s1 + $0x28] sm:$0xff]
    %v43 = vld [vmem:[%s1 + $0x30] sm:$0xff]
    %v44 = vld [vmem:[%s2] sm:$0xff]
    %vm45 = vcmask 457728
    %v47 = vsel %vm45, %v36, 0
    %49 = vmatprep.subr.mxu0 0.0
    %50 = vmatpush1.msra.mxu0 %v37
    %51 = vmatprep.subr.mxu0 0.0
    %52 = vmatpush1.msra.mxu0 %v38
    %53 = vmatprep.subr.mxu0 0.0
    %54 = vmatpush1.msra.mxu0 %v39
    %55 = vmatprep.subr.mxu0 0.0
    %56 = vmatpush1.msra.mxu0 %v40
    %57 = vmatprep.subr.mxu0 0.0
    %58 = vmatpush1.msra.mxu0 %v41
    %59 = vmatprep.subr.mxu0 0.0
    %60 = vmatpush1.msra.mxu0 %v42
    %61 = vmatprep.subr.mxu0 0.0
    %62 = vmatpush1.msra.mxu0 %v43
    %63 = vmatprep.subr.mxu0 0.0
    %64 = vmatpush1.msra.mxu0 0.0
    %65 = vmatprep.subr.mxu0 0.0
    %66 = vmatpush1.msra.mxu0 0.0
    %67 = vmatprep.subr.mxu0 0.0
    %68 = vmatpush1.msra.mxu0 0.0
    %69 = vmatprep.subr.mxu0 0.0
    %70 = vmatpush1.msra.mxu0 0.0
    %71 = vmatprep.subr.mxu0 0.0
    %72 = vmatpush1.msra.mxu0 0.0
    %73 = vmatprep.subr.mxu0 0.0
    %74 = vmatpush1.msra.mxu0 0.0
    %75 = vmatprep.subr.mxu0 0.0
    %76 = vmatpush1.msra.mxu0 0.0
    %77 = vmatprep.subr.mxu0 0.0
    %78 = vmatpush1.msra.mxu0 0.0
    %79 = vmatprep.subr.mxu0 0.0
    %80 = vmatpush1.msra.mxu0 0.0
    %81 = vmatprep.subr.mxu0 0.0
    %82 = vmatpush1.msra.mxu0 0.0
    %83 = vmatprep.subr.mxu0 0.0
    %84 = vmatpush1.msra.mxu0 0.0
    %85 = vmatprep.subr.mxu0 0.0
    %86 = vmatpush1.msra.mxu0 0.0
    %87 = vmatprep.subr.mxu0 0.0
    %88 = vmatpush1.msra.mxu0 0.0
    %89 = vmatprep.subr.mxu0 0.0
    %90 = vmatpush1.msra.mxu0 0.0
    %91 = vmatprep.subr.mxu0 0.0
    %92 = vmatpush1.msra.mxu0 0.0
    %93 = vmatprep.subr.mxu0 0.0
    %94 = vmatpush1.msra.mxu0 0.0
    %95 = vmatprep.subr.mxu0 0.0
    %96 = vmatpush1.msra.mxu0 0.0
    %97 = vmatprep.subr.mxu0 0.0
    %98 = vmatpush1.msra.mxu0 0.0
    %99 = vmatprep.subr.mxu0 0.0
    %100 = vmatpush1.msra.mxu0 0.0
    %101 = vmatprep.subr.mxu0 0.0
    %102 = vmatpush1.msra.mxu0 0.0
    %103 = vmatprep.subr.mxu0 0.0
    %104 = vmatpush1.msra.mxu0 0.0
    %105 = vmatprep.subr.mxu0 0.0
    %106 = vmatpush1.msra.mxu0 0.0
    %107 = vmatprep.subr.mxu0 0.0
    %108 = vmatpush1.msra.mxu0 0.0
    %109 = vmatprep.subr.mxu0 0.0
    %110 = vmatpush1.msra.mxu0 0.0
    %111 = vmatprep.subr.mxu0 0.0
    %112 = vmatpush1.msra.mxu0 0.0
    %113 = vmatprep.mubr.f32.mxu0 0.0
    %114 = vmatmul.mubr.f32.gmra.mrb[0].mxu0 %v47
    %v115 = vpop.f32.mrb[0].mxu0
    %v116 = vadd.f32 0.0, %v115
    %v117 = vpop.f32.mrb[0].mxu0
    %118 = vdwg.mxu0
    %vm119 = vcmask 64512
    %v121 = vsel %vm119, %v116, 0
    %123 = vmatprep.subr.mxu0 0.0
    %124 = vmatpush1.msra.mxu0 %v44
    %125 = vmatprep.subr.mxu0 0.0
    %126 = vmatpush1.msra.mxu0 0.0
    %127 = vmatprep.subr.mxu0 0.0
    %128 = vmatpush1.msra.mxu0 0.0
    %129 = vmatprep.subr.mxu0 0.0
    %130 = vmatpush1.msra.mxu0 0.0
    %131 = vmatprep.subr.mxu0 0.0
    %132 = vmatpush1.msra.mxu0 0.0
    %133 = vmatprep.subr.mxu0 0.0
    %134 = vmatpush1.msra.mxu0 0.0
    %135 = vmatprep.subr.mxu0 0.0
    %136 = vmatpush1.msra.mxu0 0.0
    %137 = vmatprep.subr.mxu0 0.0
    %138 = vmatpush1.msra.mxu0 0.0
    %139 = vmatprep.subr.mxu0 0.0
    %140 = vmatpush1.msra.mxu0 0.0
    %141 = vmatprep.subr.mxu0 0.0
    %142 = vmatpush1.msra.mxu0 0.0
    %143 = vmatprep.subr.mxu0 0.0
    %144 = vmatpush1.msra.mxu0 0.0
    %145 = vmatprep.subr.mxu0 0.0
    %146 = vmatpush1.msra.mxu0 0.0
    %147 = vmatprep.subr.mxu0 0.0
    %148 = vmatpush1.msra.mxu0 0.0
    %149 = vmatprep.subr.mxu0 0.0
    %150 = vmatpush1.msra.mxu0 0.0
    %151 = vmatprep.subr.mxu0 0.0
    %152 = vmatpush1.msra.mxu0 0.0
    %153 = vmatprep.subr.mxu0 0.0
    %154 = vmatpush1.msra.mxu0 0.0
    %155 = vmatprep.subr.mxu0 0.0
    %156 = vmatpush1.msra.mxu0 0.0
    %157 = vmatprep.subr.mxu0 0.0
    %158 = vmatpush1.msra.mxu0 0.0
    %159 = vmatprep.subr.mxu0 0.0
    %160 = vmatpush1.msra.mxu0 0.0
    %161 = vmatprep.subr.mxu0 0.0
    %162 = vmatpush1.msra.mxu0 0.0
    %163 = vmatprep.subr.mxu0 0.0
    %164 = vmatpush1.msra.mxu0 0.0
    %165 = vmatprep.subr.mxu0 0.0
    %166 = vmatpush1.msra.mxu0 0.0
    %167 = vmatprep.subr.mxu0 0.0
    %168 = vmatpush1.msra.mxu0 0.0
    %169 = vmatprep.subr.mxu0 0.0
    %170 = vmatpush1.msra.mxu0 0.0
    %171 = vmatprep.subr.mxu0 0.0
    %172 = vmatpush1.msra.mxu0 0.0
    %173 = vmatprep.subr.mxu0 0.0
    %174 = vmatpush1.msra.mxu0 0.0
    %175 = vmatprep.subr.mxu0 0.0
    %176 = vmatpush1.msra.mxu0 0.0
    %177 = vmatprep.subr.mxu0 0.0
    %178 = vmatpush1.msra.mxu0 0.0
    %179 = vmatprep.subr.mxu0 0.0
    %180 = vmatpush1.msra.mxu0 0.0
    %181 = vmatprep.subr.mxu0 0.0
    %182 = vmatpush1.msra.mxu0 0.0
    %183 = vmatprep.subr.mxu0 0.0
    %184 = vmatpush1.msra.mxu0 0.0
    %185 = vmatprep.subr.mxu0 0.0
    %186 = vmatpush1.msra.mxu0 0.0
    %187 = vmatprep.mubr.f32.mxu0 0.0
    %188 = vmatmul.mubr.f32.gmra.mrb[0].mxu0 %v121
    %v189 = vpop.f32.mrb[0].mxu0
    %v190 = vadd.f32 0.0, %v189
    %v191 = vpop.f32.mrb[0].mxu0
    %192 = vdwg.mxu0
    %v193 = vsub.f32 %v36, %v190
    %v194 = vmul.f32 %v193, %v193
    %v196 = vsel %vm45, %v194, 0
    %198 = vmatprep.subr.mxu0 0.0
    %199 = vmatpush1.msra.mxu0 %v37
    %200 = vmatprep.subr.mxu0 0.0
    %201 = vmatpush1.msra.mxu0 %v38
    %202 = vmatprep.subr.mxu0 0.0
    %203 = vmatpush1.msra.mxu0 %v39
    %204 = vmatprep.subr.mxu0 0.0
    %205 = vmatpush1.msra.mxu0 %v40
    %206 = vmatprep.subr.mxu0 0.0
    %207 = vmatpush1.msra.mxu0 %v41
    %208 = vmatprep.subr.mxu0 0.0
    %209 = vmatpush1.msra.mxu0 %v42
    %210 = vmatprep.subr.mxu0 0.0
    %211 = vmatpush1.msra.mxu0 %v43
    %212 = vmatprep.subr.mxu0 0.0
    %213 = vmatpush1.msra.mxu0 0.0
    %214 = vmatprep.subr.mxu0 0.0
    %215 = vmatpush1.msra.mxu0 0.0
    %216 = vmatprep.subr.mxu0 0.0
    %217 = vmatpush1.msra.mxu0 0.0
    %218 = vmatprep.subr.mxu0 0.0
    %219 = vmatpush1.msra.mxu0 0.0
    %220 = vmatprep.subr.mxu0 0.0
    %221 = vmatpush1.msra.mxu0 0.0
    %222 = vmatprep.subr.mxu0 0.0
    %223 = vmatpush1.msra.mxu0 0.0
    %224 = vmatprep.subr.mxu0 0.0
    %225 = vmatpush1.msra.mxu0 0.0
    %226 = vmatprep.subr.mxu0 0.0
    %227 = vmatpush1.msra.mxu0 0.0
    %228 = vmatprep.subr.mxu0 0.0
    %229 = vmatpush1.msra.mxu0 0.0
    %230 = vmatprep.subr.mxu0 0.0
    %231 = vmatpush1.msra.mxu0 0.0
    %232 = vmatprep.subr.mxu0 0.0
    %233 = vmatpush1.msra.mxu0 0.0
    %234 = vmatprep.subr.mxu0 0.0
    %235 = vmatpush1.msra.mxu0 0.0
    %236 = vmatprep.subr.mxu0 0.0
    %237 = vmatpush1.msra.mxu0 0.0
    %238 = vmatprep.subr.mxu0 0.0
    %239 = vmatpush1.msra.mxu0 0.0
    %240 = vmatprep.subr.mxu0 0.0
    %241 = vmatpush1.msra.mxu0 0.0
    %242 = vmatprep.subr.mxu0 0.0
    %243 = vmatpush1.msra.mxu0 0.0
    %244 = vmatprep.subr.mxu0 0.0
    %245 = vmatpush1.msra.mxu0 0.0
    %246 = vmatprep.subr.mxu0 0.0
    %247 = vmatpush1.msra.mxu0 0.0
    %248 = vmatprep.subr.mxu0 0.0
    %249 = vmatpush1.msra.mxu0 0.0
    %250 = vmatprep.subr.mxu0 0.0
    %251 = vmatpush1.msra.mxu0 0.0
    %252 = vmatprep.subr.mxu0 0.0
    %253 = vmatpush1.msra.mxu0 0.0
    %254 = vmatprep.subr.mxu0 0.0
    %255 = vmatpush1.msra.mxu0 0.0
    %256 = vmatprep.subr.mxu0 0.0
    %257 = vmatpush1.msra.mxu0 0.0
    %258 = vmatprep.subr.mxu0 0.0
    %259 = vmatpush1.msra.mxu0 0.0
    %260 = vmatprep.subr.mxu0 0.0
    %261 = vmatpush1.msra.mxu0 0.0
    %262 = vmatprep.mubr.f32.mxu0 0.0
    %263 = vmatmul.mubr.f32.gmra.mrb[0].mxu0 %v196
    %v264 = vpop.f32.mrb[0].mxu0
    %v265 = vadd.f32 1e-05, %v264
    %v266 = vpop.f32.mrb[0].mxu0
    %267 = vdwg.mxu0
    %v268 = vrsqrt.pop %v265
    %v270 = vsel %vm119, %v268, 0
    %272 = vmatprep.subr.mxu0 0.0
    %273 = vmatpush1.msra.mxu0 %v44
    %274 = vmatprep.subr.mxu0 0.0
    %275 = vmatpush1.msra.mxu0 0.0
    %276 = vmatprep.subr.mxu0 0.0
    %277 = vmatpush1.msra.mxu0 0.0
    %278 = vmatprep.subr.mxu0 0.0
    %279 = vmatpush1.msra.mxu0 0.0
    %280 = vmatprep.subr.mxu0 0.0
    %281 = vmatpush1.msra.mxu0 0.0
    %282 = vmatprep.subr.mxu0 0.0
    %283 = vmatpush1.msra.mxu0 0.0
    %284 = vmatprep.subr.mxu0 0.0
    %285 = vmatpush1.msra.mxu0 0.0
    %286 = vmatprep.subr.mxu0 0.0
    %287 = vmatpush1.msra.mxu0 0.0
    %288 = vmatprep.subr.mxu0 0.0
    %289 = vmatpush1.msra.mxu0 0.0
    %290 = vmatprep.subr.mxu0 0.0
    %291 = vmatpush1.msra.mxu0 0.0
    %292 = vmatprep.subr.mxu0 0.0
    %293 = vmatpush1.msra.mxu0 0.0
    %294 = vmatprep.subr.mxu0 0.0
    %295 = vmatpush1.msra.mxu0 0.0
    %296 = vmatprep.subr.mxu0 0.0
    %297 = vmatpush1.msra.mxu0 0.0
    %298 = vmatprep.subr.mxu0 0.0
    %299 = vmatpush1.msra.mxu0 0.0
    %300 = vmatprep.subr.mxu0 0.0
    %301 = vmatpush1.msra.mxu0 0.0
    %302 = vmatprep.subr.mxu0 0.0
    %303 = vmatpush1.msra.mxu0 0.0
    %304 = vmatprep.subr.mxu0 0.0
    %305 = vmatpush1.msra.mxu0 0.0
    %306 = vmatprep.subr.mxu0 0.0
    %307 = vmatpush1.msra.mxu0 0.0
    %308 = vmatprep.subr.mxu0 0.0
    %309 = vmatpush1.msra.mxu0 0.0
    %310 = vmatprep.subr.mxu0 0.0
    %311 = vmatpush1.msra.mxu0 0.0
    %312 = vmatprep.subr.mxu0 0.0
    %313 = vmatpush1.msra.mxu0 0.0
    %314 = vmatprep.subr.mxu0 0.0
    %315 = vmatpush1.msra.mxu0 0.0
    %316 = vmatprep.subr.mxu0 0.0
    %317 = vmatpush1.msra.mxu0 0.0
    %318 = vmatprep.subr.mxu0 0.0
    %319 = vmatpush1.msra.mxu0 0.0
    %320 = vmatprep.subr.mxu0 0.0
    %321 = vmatpush1.msra.mxu0 0.0
    %322 = vmatprep.subr.mxu0 0.0
    %323 = vmatpush1.msra.mxu0 0.0
    %324 = vmatprep.subr.mxu0 0.0
    %325 = vmatpush1.msra.mxu0 0.0
    %326 = vmatprep.subr.mxu0 0.0
    %327 = vmatpush1.msra.mxu0 0.0
    %328 = vmatprep.subr.mxu0 0.0
    %329 = vmatpush1.msra.mxu0 0.0
    %330 = vmatprep.subr.mxu0 0.0
    %331 = vmatpush1.msra.mxu0 0.0
    %332 = vmatprep.subr.mxu0 0.0
    %333 = vmatpush1.msra.mxu0 0.0
    %334 = vmatprep.subr.mxu0 0.0
    %335 = vmatpush1.msra.mxu0 0.0
    %336 = vmatprep.mubr.f32.mxu0 0.0
    %337 = vmatmul.mubr.f32.gmra.mrb[0].mxu0 %v270
    %v338 = vpop.f32.mrb[0].mxu0
    %v339 = vadd.f32 0.0, %v338
    %v340 = vpop.f32.mrb[0].mxu0
    %341 = vdwg.mxu0
    %v342 = vmul.f32 %v193, %v339
    %v343 = vpack.c.bf16 %v342, %v342
    %v344 = vld [vmem:[%s3] sm:$0xff]
    %v345 = vld [vmem:[%s3 + $0x8] sm:$0xff]
    %v346 = vld [vmem:[%s3 + $0x10] sm:$0xff]
    %v347 = vld [vmem:[%s3 + $0x18] sm:$0xff]
    %v348 = vld [vmem:[%s3 + $0x20] sm:$0xff]
    %v349 = vld [vmem:[%s3 + $0x28] sm:$0xff]
    %v350 = vld [vmem:[%s3 + $0x30] sm:$0xff]
    %v358 = vunpack.c.l.b16 %v344
    %v359 = vunpack.c.h.b16 %v344
    %v360 = vunpack.c.l.b16 %v345
    %v361 = vunpack.c.h.b16 %v345
    %v362 = vunpack.c.l.b16 %v346
    %v363 = vunpack.c.h.b16 %v346
    %v364 = vunpack.c.l.b16 %v347
    %v365 = vunpack.c.h.b16 %v347
    %v366 = vunpack.c.l.b16 %v348
    %v367 = vunpack.c.h.b16 %v348
    %v368 = vunpack.c.l.b16 %v349
    %v369 = vunpack.c.h.b16 %v349
    %v370 = vunpack.c.l.b16 %v350
    %v371 = vunpack.c.h.b16 %v350
    %v372 = vpack.c.b16 %v360, %v358
    %v373 = vpack.c.b16 %v361, %v359
    %v374 = vpack.c.b16 %v364, %v362
    %v375 = vpack.c.b16 %v365, %v363
    %v376 = vpack.c.b16 %v368, %v366
    %v377 = vpack.c.b16 %v369, %v367
    %v378 = vpack.c.b16 %v370, %v370
    %v379 = vpack.c.b16 %v371, %v371
    %v387 = vsel %vm45, %v343, 0
    %vm389 = vcmask 1043456
    %v391 = vsel %vm389, %v378, 0
    %v394 = vsel %vm389, %v379, 0
    %396 = vmatprep.subr.bf16.mxu0 %v373
    %397 = vmatpush1.bf16.msra.mxu0 %v372
    %398 = vmatprep.subr.bf16.mxu0 %v375
    %399 = vmatpush1.bf16.msra.mxu0 %v374
    %400 = vmatprep.subr.bf16.mxu0 %v377
    %401 = vmatpush1.bf16.msra.mxu0 %v376
    %402 = vmatprep.subr.bf16.mxu0 %v394
    %403 = vmatpush1.bf16.msra.mxu0 %v391
    %404 = vmatprep.subr.bf16.mxu0 0
    %405 = vmatpush1.bf16.msra.mxu0 0
    %406 = vmatprep.subr.bf16.mxu0 0
    %407 = vmatpush1.bf16.msra.mxu0 0
    %408 = vmatprep.subr.bf16.mxu0 0
    %409 = vmatpush1.bf16.msra.mxu0 0
    %410 = vmatprep.subr.bf16.mxu0 0
    %411 = vmatpush1.bf16.msra.mxu0 0
    %412 = vmatprep.subr.bf16.mxu0 0
    %413 = vmatpush1.bf16.msra.mxu0 0
    %414 = vmatprep.subr.bf16.mxu0 0
    %415 = vmatpush1.bf16.msra.mxu0 0
    %416 = vmatprep.subr.bf16.mxu0 0
    %417 = vmatpush1.bf16.msra.mxu0 0
    %418 = vmatprep.subr.bf16.mxu0 0
    %419 = vmatpush1.bf16.msra.mxu0 0
    %420 = vmatprep.subr.bf16.mxu0 0
    %421 = vmatpush1.bf16.msra.mxu0 0
    %422 = vmatprep.subr.bf16.mxu0 0
    %423 = vmatpush1.bf16.msra.mxu0 0
    %424 = vmatprep.subr.bf16.mxu0 0
    %425 = vmatpush1.bf16.msra.mxu0 0
    %426 = vmatprep.subr.bf16.mxu0 0
    %427 = vmatpush1.bf16.msra.mxu0 0
    %428 = vmatprep.mubr.bf16.mxu0 0
    %429 = vmatmul.mubr.bf16.gmra.mrb[0].mxu0 %v387
    %v430 = vpop.f32.mrb[0].mxu0
    %v431 = vadd.f32 0.0, %v430
    %v432 = vpop.f32.mrb[0].mxu0
    %v433 = vadd.f32 0.0, %v432
    %v434 = vpop.f32.mrb[0].mxu0
    %v435 = vpop.f32.mrb[0].mxu0
    %436 = vdwg.mxu0
    %vm437 = vcmp.ge.f32.partialorder %v431, 0.0
    %vm438 = vcmp.ge.f32.partialorder %v433, 0.0
    %v439 = vmul.f32 %v431, 0.01
    %v440 = vmul.f32 %v433, 0.01
    %v441 = vsel %vm437, %v431, %v439
    %v442 = vsel %vm438, %v433, %v440
    %v443 = vadd.f32 %v441, %v442
    %444 = vadd.xlane.f32.xlu0 %v443
    %v445 = vpop.xlane.xlu0 %444
    %v446 = vrcp.pop 256.0
    %v447 = vmul.f32 %v445, %v446
    %v448 = vsub.f32 %v441, %v447
    %v449 = vsub.f32 %v442, %v447
    %v450 = vmul.f32 %v448, %v448
    %v451 = vmul.f32 %v449, %v449
    %v452 = vadd.f32 %v450, %v451
    %453 = vadd.xlane.f32.xlu0 %v452
    %v454 = vpop.xlane.xlu0 %453
    %v455 = vmul.f32 %v454, %v446
    %v456 = vadd.f32 %v455, 1e-05
    %v457 = vrsqrt.pop %v456
    %v458 = vmul.f32 %v448, %v457
    %v459 = vmul.f32 %v449, %v457
    %v460 = vpack.c.bf16 %v458, %v458
    %v461 = vpack.c.bf16 %v459, %v459
    %v462 = vld [vmem:[#allocation2] sm:$0xff]
    %v463 = vld [vmem:[#allocation2 + $0x8] sm:$0xff]
    %v464 = vld [vmem:[#allocation2 + $0x10] sm:$0xff]
    %v465 = vld [vmem:[#allocation2 + $0x18] sm:$0xff]
    %v466 = vld [vmem:[#allocation2 + $0x20] sm:$0xff]
    %v467 = vld [vmem:[#allocation2 + $0x28] sm:$0xff]
    %v468 = vld [vmem:[#allocation2 + $0x30] sm:$0xff]
    %v469 = vld [vmem:[#allocation2 + $0x38] sm:$0xff]
    %v470 = vld [vmem:[#allocation2 + $0x40] sm:$0xff]
    %v471 = vld [vmem:[#allocation2 + $0x48] sm:$0xff]
    %v472 = vld [vmem:[#allocation2 + $0x50] sm:$0xff]
    %v473 = vld [vmem:[#allocation2 + $0x58] sm:$0xff]
    %v474 = vld [vmem:[#allocation2 + $0x60] sm:$0xff]
    %v475 = vld [vmem:[#allocation2 + $0x68] sm:$0xff]
    %v476 = vld [vmem:[#allocation2 + $0x70] sm:$0xff]
    %v477 = vld [vmem:[#allocation2 + $0x78] sm:$0xff]
    %v478 = vld [vmem:[#allocation2 + $0x80] sm:$0xff]
    %v479 = vld [vmem:[#allocation2 + $0x88] sm:$0xff]
    %v480 = vld [vmem:[#allocation2 + $0x90] sm:$0xff]
    %v481 = vld [vmem:[#allocation2 + $0x98] sm:$0xff]
    %v482 = vld [vmem:[#allocation2 + $0xa0] sm:$0xff]
    %v483 = vld [vmem:[#allocation2 + $0xa8] sm:$0xff]
    %v484 = vld [vmem:[#allocation2 + $0xb0] sm:$0xff]
    %v485 = vld [vmem:[#allocation2 + $0xb8] sm:$0xff]
    %v486 = vld [vmem:[#allocation2 + $0xc0] sm:$0xff]
    %v487 = vld [vmem:[#allocation2 + $0xc8] sm:$0xff]
    %v488 = vld [vmem:[#allocation2 + $0xd0] sm:$0xff]
    %v489 = vld [vmem:[#allocation2 + $0xd8] sm:$0xff]
    %v490 = vld [vmem:[#allocation2 + $0xe0] sm:$0xff]
    %v491 = vld [vmem:[#allocation2 + $0xe8] sm:$0xff]
    %v492 = vld [vmem:[#allocation2 + $0xf0] sm:$0xff]
    %v493 = vld [vmem:[#allocation2 + $0xf8] sm:$0xff]
    %v526 = vunpack.c.l.b16 %v462
    %v527 = vunpack.c.h.b16 %v462
    %v528 = vunpack.c.l.b16 %v463
    %v529 = vunpack.c.h.b16 %v463
    %v530 = vunpack.c.l.b16 %v464
    %v531 = vunpack.c.h.b16 %v464
    %v532 = vunpack.c.l.b16 %v465
    %v533 = vunpack.c.h.b16 %v465
    %v534 = vunpack.c.l.b16 %v466
    %v535 = vunpack.c.h.b16 %v466
    %v536 = vunpack.c.l.b16 %v467
    %v537 = vunpack.c.h.b16 %v467
    %v538 = vunpack.c.l.b16 %v468
    %v539 = vunpack.c.h.b16 %v468
    %v540 = vunpack.c.l.b16 %v469
    %v541 = vunpack.c.h.b16 %v469
    %v542 = vunpack.c.l.b16 %v470
    %v543 = vunpack.c.h.b16 %v470
    %v544 = vunpack.c.l.b16 %v471
    %v545 = vunpack.c.h.b16 %v471
    %v546 = vunpack.c.l.b16 %v472
    %v547 = vunpack.c.h.b16 %v472
    %v548 = vunpack.c.l.b16 %v473
    %v549 = vunpack.c.h.b16 %v473
    %v550 = vunpack.c.l.b16 %v474
    %v551 = vunpack.c.h.b16 %v474
    %v552 = vunpack.c.l.b16 %v475
    %v553 = vunpack.c.h.b16 %v475
    %v554 = vunpack.c.l.b16 %v476
    %v555 = vunpack.c.h.b16 %v476
    %v556 = vunpack.c.l.b16 %v477
    %v557 = vunpack.c.h.b16 %v477
    %v558 = vunpack.c.l.b16 %v478
    %v559 = vunpack.c.h.b16 %v478
    %v560 = vunpack.c.l.b16 %v479
    %v561 = vunpack.c.h.b16 %v479
    %v562 = vunpack.c.l.b16 %v480
    %v563 = vunpack.c.h.b16 %v480
    %v564 = vunpack.c.l.b16 %v481
    %v565 = vunpack.c.h.b16 %v481
    %v566 = vunpack.c.l.b16 %v482
    %v567 = vunpack.c.h.b16 %v482
    %v568 = vunpack.c.l.b16 %v483
    %v569 = vunpack.c.h.b16 %v483
    %v570 = vunpack.c.l.b16 %v484
    %v571 = vunpack.c.h.b16 %v484
    %v572 = vunpack.c.l.b16 %v485
    %v573 = vunpack.c.h.b16 %v485
    %v574 = vunpack.c.l.b16 %v486
    %v575 = vunpack.c.h.b16 %v486
    %v576 = vunpack.c.l.b16 %v487
    %v577 = vunpack.c.h.b16 %v487
    %v578 = vunpack.c.l.b16 %v488
    %v579 = vunpack.c.h.b16 %v488
    %v580 = vunpack.c.l.b16 %v489
    %v581 = vunpack.c.h.b16 %v489
    %v582 = vunpack.c.l.b16 %v490
    %v583 = vunpack.c.h.b16 %v490
    %v584 = vunpack.c.l.b16 %v491
    %v585 = vunpack.c.h.b16 %v491
    %v586 = vunpack.c.l.b16 %v492
    %v587 = vunpack.c.h.b16 %v492
    %v588 = vunpack.c.l.b16 %v493
    %v589 = vunpack.c.h.b16 %v493
    %v590 = vpack.c.b16 %v528, %v526
    %v591 = vpack.c.b16 %v529, %v527
    %v592 = vpack.c.b16 %v532, %v530
    %v593 = vpack.c.b16 %v533, %v531
    %v594 = vpack.c.b16 %v536, %v534
    %v595 = vpack.c.b16 %v537, %v535
    %v596 = vpack.c.b16 %v540, %v538
    %v597 = vpack.c.b16 %v541, %v539
    %v598 = vpack.c.b16 %v544, %v542
    %v599 = vpack.c.b16 %v545, %v543
    %v600 = vpack.c.b16 %v548, %v546
    %v601 = vpack.c.b16 %v549, %v547
    %v602 = vpack.c.b16 %v552, %v550
    %v603 = vpack.c.b16 %v553, %v551
    %v604 = vpack.c.b16 %v556, %v554
    %v605 = vpack.c.b16 %v557, %v555
    %v606 = vpack.c.b16 %v560, %v558
    %v607 = vpack.c.b16 %v561, %v559
    %v608 = vpack.c.b16 %v564, %v562
    %v609 = vpack.c.b16 %v565, %v563
    %v610 = vpack.c.b16 %v568, %v566
    %v611 = vpack.c.b16 %v569, %v567
    %v612 = vpack.c.b16 %v572, %v570
    %v613 = vpack.c.b16 %v573, %v571
    %v614 = vpack.c.b16 %v576, %v574
    %v615 = vpack.c.b16 %v577, %v575
    %v616 = vpack.c.b16 %v580, %v578
    %v617 = vpack.c.b16 %v581, %v579
    %v618 = vpack.c.b16 %v584, %v582
    %v619 = vpack.c.b16 %v585, %v583
    %v620 = vpack.c.b16 %v588, %v586
    %v621 = vpack.c.b16 %v589, %v587
    %654 = vmatprep.subr.bf16.mxu0 %v591
    %655 = vmatpush1.bf16.msra.mxu0 %v590
    %656 = vmatprep.subr.bf16.mxu0 %v593
    %657 = vmatpush1.bf16.msra.mxu0 %v592
    %658 = vmatprep.subr.bf16.mxu0 %v595
    %659 = vmatpush1.bf16.msra.mxu0 %v594
    %660 = vmatprep.subr.bf16.mxu0 %v597
    %661 = vmatpush1.bf16.msra.mxu0 %v596
    %662 = vmatprep.subr.bf16.mxu0 %v599
    %663 = vmatpush1.bf16.msra.mxu0 %v598
    %664 = vmatprep.subr.bf16.mxu0 %v601
    %665 = vmatpush1.bf16.msra.mxu0 %v600
    %666 = vmatprep.subr.bf16.mxu0 %v603
    %667 = vmatpush1.bf16.msra.mxu0 %v602
    %668 = vmatprep.subr.bf16.mxu0 %v605
    %669 = vmatpush1.bf16.msra.mxu0 %v604
    %670 = vmatprep.subr.bf16.mxu0 %v607
    %671 = vmatpush1.bf16.msra.mxu0 %v606
    %672 = vmatprep.subr.bf16.mxu0 %v609
    %673 = vmatpush1.bf16.msra.mxu0 %v608
    %674 = vmatprep.subr.bf16.mxu0 %v611
    %675 = vmatpush1.bf16.msra.mxu0 %v610
    %676 = vmatprep.subr.bf16.mxu0 %v613
    %677 = vmatpush1.bf16.msra.mxu0 %v612
    %678 = vmatprep.subr.bf16.mxu0 %v615
    %679 = vmatpush1.bf16.msra.mxu0 %v614
    %680 = vmatprep.subr.bf16.mxu0 %v617
    %681 = vmatpush1.bf16.msra.mxu0 %v616
    %682 = vmatprep.subr.bf16.mxu0 %v619
    %683 = vmatpush1.bf16.msra.mxu0 %v618
    %684 = vmatprep.subr.bf16.mxu0 %v621
    %685 = vmatpush1.bf16.msra.mxu0 %v620
    %686 = vmatprep.mubr.bf16.mxu0 %v461
    %687 = vmatmul.mubr.bf16.gmra.mrb[0].mxu0 %v460
    %v688 = vpop.f32.mrb[0].mxu0
    %v689 = vadd.f32 0.0, %v688
    %v690 = vpop.f32.mrb[0].mxu0
    %v691 = vadd.f32 0.0, %v690
    %v692 = vpop.f32.mrb[0].mxu0
    %v693 = vpop.f32.mrb[0].mxu0
    %694 = vdwg.mxu0
    %vm695 = vcmp.ge.f32.partialorder %v689, 0.0
    %vm696 = vcmp.ge.f32.partialorder %v691, 0.0
    %v697 = vmul.f32 %v689, 0.01
    %v698 = vmul.f32 %v691, 0.01
    %v699 = vsel %vm695, %v689, %v697
    %v700 = vsel %vm696, %v691, %v698
    %701 = vst [vmem:[#allocation5] sm:$0xff] %v699
    %702 = vst [vmem:[#allocation5 + $0x8] sm:$0xff] %v700
    // Predicated region
    $region26: #{tpu_custom_call.1} parent=1 // pred_check
      _
    $region27: #{tpu_custom_call.1} parent=1 // pred_check_branch
      %704 = sbr.rel (0) target = $region29
    $region28: #{tpu_custom_call.1} parent=1 // pred_region
      %s706 = ssub.s32 256, 256
      %707 = vsyncadd [#allocation4], %s706
      %s709 = sshll.u32 [#allocation5], 4
      %s710 = int_to_ptr.vmem [resolvable:$true] %s709
      %712 = dma.vmem_to_hbm [thread:$0]  %s710, 256, %s5, [#allocation4]
    $region29: #{tpu_custom_call.1} parent=1 // pred_fallthru
      _
    // Predicated region
    $region30: #{tpu_custom_call.1} parent=1 // pred_check
      _
    $region31: #{tpu_custom_call.1} parent=1 // pred_check_branch
      %714 = sbr.rel (0) target = $region33
    $region32: #{tpu_custom_call.1} parent=1 // pred_region
      %715 = dma.done [#allocation4], 256
    $region33: #{tpu_custom_call.1} parent=1 // pred_fallthru
      _
    %716 = vsyncpa [#allocation3], 1
    %717 = vsyncpa [#allocation4], 1

</llo_original>
